<compile_context>
chip_gen: v6e
topology: v6e:2x2x1
jax: 0.10.0
libtpu: 0.0.40
codegen_flags: <defaults>
</compile_context>

<pallas_src>
import functools

import jax
import jax.numpy as jnp
from jax import lax
from jax.experimental import pallas as pl
from jax.experimental.pallas import tpu as pltpu


def _cdiv(a: int, b: int) -> int:
    return -(-a // b)


def _sublane_pack(dtype) -> int:
    itemsize = jnp.dtype(dtype).itemsize
    return {4: 8, 2: 16, 1: 32}.get(itemsize, 8)


def _tpu_params():
    """Best-effort hardware query; falls back to conservative defaults."""
    vmem_cap = 128 << 20
    try:
        info = pltpu.get_tpu_info()
        vmem_cap = int(getattr(info, "vmem_capacity_bytes", vmem_cap))
    except Exception:
        pass
    # v7x-class parts expose ~64 MiB VMEM per TensorCore and have 2 TCs/chip.
    two_tc = vmem_cap <= (64 << 20)
    return vmem_cap, two_tc


def _choose_block_rows(num_rows: int, d: int, dtype, per_block_budget: int,
                       two_tc: bool) -> int:
    """Largest sublane-aligned row block under a per-generation VMEM budget."""
    pack = _sublane_pack(dtype)
    itemsize = jnp.dtype(dtype).itemsize
    row_bytes = max(d * itemsize, 1)
    max_rows = max(pack, (per_block_budget // row_bytes) // pack * pack)
    max_rows = min(max_rows, 2048)
    if two_tc and num_rows > pack:
        # Keep at least 2 grid steps so both v7x TensorCores get work.
        half = _cdiv(_cdiv(num_rows, 2), pack) * pack
        max_rows = min(max_rows, max(half, pack))
    block_rows = min(max_rows, _cdiv(num_rows, pack) * pack)
    return max(block_rows, pack)


def _rmsnorm_kernel(x_ref, w_ref, o_ref, *, eps, inv_d):
    # x_ref: (TM, D), w_ref: (1, D), o_ref: (TM, D)
    x = x_ref[...].astype(jnp.float32)
    ms = jnp.sum(x * x, axis=-1, keepdims=True) * inv_d   # XLU reduce, (TM, 1)
    inv = lax.rsqrt(ms + eps)                             # EUP, (TM, 1)
    w = w_ref[...].astype(jnp.float32)                    # (1, D) broadcasts
    o_ref[...] = (x * inv * w).astype(o_ref.dtype)


def rmsnorm(x, weight, *, eps=None):
    """RMSNorm over the last axis of x with per-feature scale `weight`."""
    orig_shape = x.shape
    D = orig_shape[-1]
    if eps is None:
        eps = float(jnp.finfo(x.dtype).eps)   # torch.nn.RMSNorm eps=None default

    x2d = x.reshape(-1, D)                    # metadata-only reshape
    R = x2d.shape[0]
    w2d = weight.reshape(1, D)

    vmem_cap, two_tc = _tpu_params()
    per_block_budget = (4 << 20) if two_tc else (8 << 20)

    block_rows = _choose_block_rows(R, D, x.dtype, per_block_budget, two_tc)
    grid = _cdiv(R, block_rows)

    # On 2-TC parts, prefer an even (small) grid so neither core gets an extra
    # exposed block.
    if two_tc and 1 < grid <= 8 and grid % 2 == 1:
        pack = _sublane_pack(x.dtype)
        br2 = max(pack, _cdiv(_cdiv(R, grid + 1), pack) * pack)
        if _cdiv(R, br2) % 2 == 0:
            block_rows = br2
            grid = _cdiv(R, block_rows)

    itemsize = jnp.dtype(x.dtype).itemsize
    block_bytes = block_rows * D * itemsize
    in_bufs = 3 if (two_tc and grid >= 3) else 2
    vmem_needed = (in_bufs + 2) * block_bytes + 2 * D * 4 + (8 << 20)
    vmem_cap_margin = max(vmem_cap - (16 << 20), 32 << 20)
    vmem_limit = int(min(max(vmem_needed, 16 << 20), min(vmem_cap_margin, 96 << 20)))

    x_spec = pl.BlockSpec((block_rows, D), lambda i: (i, 0))
    if in_bufs == 3:
        try:
            x_spec = pl.BlockSpec((block_rows, D), lambda i: (i, 0),
                                  pipeline_mode=pl.Buffered(3))
        except Exception:
            x_spec = pl.BlockSpec((block_rows, D), lambda i: (i, 0))

    kernel = functools.partial(_rmsnorm_kernel, eps=eps, inv_d=1.0 / D)

    out = pl.pallas_call(
        kernel,
        out_shape=jax.ShapeDtypeStruct((R, D), x.dtype),
        grid_spec=pltpu.PrefetchScalarGridSpec(
            num_scalar_prefetch=0,
            grid=(grid,),
            in_specs=[
                x_spec,
                pl.BlockSpec((1, D), lambda i: (0, 0)),
            ],
            out_specs=pl.BlockSpec((block_rows, D), lambda i: (i, 0)),
        ),
        compiler_params=pltpu.CompilerParams(
            dimension_semantics=("parallel",),
            vmem_limit_bytes=vmem_limit,
        ),
    )(x2d, w2d)

    return out.reshape(orig_shape)


class Normalization:
    """JAX/Pallas equivalent of the PyTorch `Normalization` module."""

    def __init__(self, embeddings_dims: int = 512):
        # torch.nn.RMSNorm default: elementwise_affine=True, weight init = ones
        self.embeddings_dims = embeddings_dims
        self.weight = jnp.ones((embeddings_dims,), dtype=jnp.float32)

    def __call__(self, x):
        return rmsnorm(x, self.weight)


if __name__ == "__main__":
    # Small shapes consistent with the module: batch=2, seq=8, hidden=512
    B, S, D = 2, 8, 512
    key = jax.random.PRNGKey(0)
    x = jax.random.normal(key, (B, S, D), dtype=jnp.float32)

    norm = Normalization(embeddings_dims=D)
    y = jax.block_until_ready(norm(x))

    # Sanity check against a pure-JAX reference (torch.nn.RMSNorm semantics).
    eps = float(jnp.finfo(x.dtype).eps)
    ref = x * lax.rsqrt(jnp.mean(x * x, axis=-1, keepdims=True) + eps)
    assert y.shape == x.shape
    assert jnp.allclose(y, ref, atol=1e-5, rtol=1e-5), "mismatch vs reference"

    # Also exercise a row count that does not divide the block (ragged boundary
    # block path, no host-side padding).
    x_odd = jax.random.normal(jax.random.PRNGKey(1), (3, 5, D), dtype=jnp.float32)
    y_odd = jax.block_until_ready(norm(x_odd))
    ref_odd = x_odd * lax.rsqrt(jnp.mean(x_odd * x_odd, axis=-1, keepdims=True) + eps)
    assert jnp.allclose(y_odd, ref_odd, atol=1e-5, rtol=1e-5), "mismatch (odd rows)"

    print("KERNEL_OK")
</pallas_src>

<mosaic_0001>
module attributes {stable_mosaic.version = 11 : i64} {
  func.func @_rmsnorm_kernel(%arg0: i32, %arg1: memref<16x512xf32, #tpu.memory_space<vmem>>, %arg2: memref<1x512xf32, #tpu.memory_space<vmem>>, %arg3: memref<16x512xf32, #tpu.memory_space<vmem>>) attributes {dimension_semantics = [#tpu.dimension_semantics<parallel>], iteration_bounds = array<i64: 1>, scalar_prefetch = 0 : i64, scratch_operands = 0 : i64, tpu.core_type = #tpu.core_type<tc>, window_params = [{transform_indices = @transform_0, window_bounds = array<i64: 16, 512>}, {pipeline_mode = #tpu.pipeline_mode<synchronous>, transform_indices = @transform_1, window_bounds = array<i64: 1, 512>}, {transform_indices = @transform_2, window_bounds = array<i64: 16, 512>}]} {
    %c0 = arith.constant 0 : index
    %c0_0 = arith.constant 0 : index
    %0 = vector.load %arg1[%c0, %c0_0] : memref<16x512xf32, #tpu.memory_space<vmem>>, vector<16x512xf32>
    %1 = arith.mulf %0, %0 : vector<16x512xf32>
    %cst = arith.constant dense<0.000000e+00> : vector<16xf32>
    %2 = vector.multi_reduction <add>, %1, %cst [1] : vector<16x512xf32> to vector<16xf32>
    %3 = vector.shape_cast %2 : vector<16xf32> to vector<16x1xf32>
    %cst_1 = arith.constant 0.001953125 : f32
    %4 = vector.broadcast %cst_1 : f32 to vector<16x1xf32>
    %5 = arith.mulf %3, %4 : vector<16x1xf32>
    %cst_2 = arith.constant 1.1920929E-7 : f32
    %6 = vector.broadcast %cst_2 : f32 to vector<16x1xf32>
    %7 = arith.addf %5, %6 : vector<16x1xf32>
    %8 = math.rsqrt %7 : vector<16x1xf32>
    %c0_3 = arith.constant 0 : index
    %c0_4 = arith.constant 0 : index
    %9 = vector.load %arg2[%c0_3, %c0_4] : memref<1x512xf32, #tpu.memory_space<vmem>>, vector<1x512xf32>
    %10 = vector.broadcast %8 : vector<16x1xf32> to vector<16x512xf32>
    %11 = arith.mulf %0, %10 : vector<16x512xf32>
    %12 = vector.broadcast %9 : vector<1x512xf32> to vector<16x512xf32>
    %13 = arith.mulf %11, %12 : vector<16x512xf32>
    %c0_5 = arith.constant 0 : index
    %c0_6 = arith.constant 0 : index
    %14 = vector.load %arg3[%c0_5, %c0_6] : memref<16x512xf32, #tpu.memory_space<vmem>>, vector<16x512xf32>
    tpu.vector_store %arg3[%c0_5, %c0_6], %13 {strides = array<i32>} : memref<16x512xf32, #tpu.memory_space<vmem>>, vector<16x512xf32>,
    return
  }
  func.func @transform_0(%arg0: i32) -> (i32, i32) {
    %c0_i32 = arith.constant 0 : i32
    %c0_i32_0 = arith.constant 0 : i32
    return %arg0, %c0_i32 : i32, i32
  }
  func.func @transform_1(%arg0: i32) -> (i32, i32) {
    %c0_i32 = arith.constant 0 : i32
    %c0_i32_0 = arith.constant 0 : i32
    %c0_i32_1 = arith.constant 0 : i32
    return %c0_i32, %c0_i32_0 : i32, i32
  }
  func.func @transform_2(%arg0: i32) -> (i32, i32) {
    %c0_i32 = arith.constant 0 : i32
    %c0_i32_0 = arith.constant 0 : i32
    return %arg0, %c0_i32 : i32, i32
  }
}

</mosaic_0001>

<llo_original>
// kernel: tpu_custom_call.1
$region0: #{tpu_custom_call.1}
  #allocation0 [shape = 'u32[]', space=smem, size = 0x4, offset = 0x4, fixed_abs, tag = 'smem constant byte address 0x4 - core index']
  #allocation1 [shape = 'u32[144,128]{1,0:T(1,128)}', space=vmem, size = 0x12000, scoped, tag = 'internal scratch']
  %s0 = inlined_call_operand.hbm [shape: f32[16,512], index: 0, kind: input, shape index: {}]
  %s1 = inlined_call_operand.hbm [shape: f32[1,512], index: 1, kind: input, shape index: {}]
  %s2 = inlined_call_operand.hbm [shape: f32[16,512], index: 2, kind: output, shape index: {}]
  %s3 = sld [smem:[#allocation0]]
  $region26: #{tpu_custom_call.1} parent=0
    _
  %s5 = ssub.s32 1, %s3
  %s6 = scalar_select 0, %s5, %s3
  $region1: #{tpu_custom_call.1} parent=0
    #allocation2 [shape = 'u8[32768]{0}', space=vmem, size = 0x8000, scoped, tag = 'input window, operand 0, single buffered']
    #allocation3 [shape = 's32[1]{0}', space=sflag, size = 0x4, scoped, tag = 'scoped memory for tpu_custom_call.1']
    #allocation4 [shape = 's32[1]{0}', space=sflag, size = 0x4, scoped, tag = 'scoped memory for tpu_custom_call.1']
    #allocation5 [shape = 'u8[2048]{0}', space=vmem, size = 0x800, scoped, tag = 'input window, operand 1, single buffered']
    #allocation6 [shape = 's32[1]{0}', space=sflag, size = 0x4, scoped, tag = 'scoped memory for tpu_custom_call.1']
    #allocation7 [shape = 'u8[32768]{0}', space=vmem, size = 0x8000, scoped, tag = 'output window, operand 0, single buffered']
    %7 = vsyncpa [#allocation3], 0
    %8 = vsyncpa [#allocation6], 0
    %9 = vsyncpa [#allocation4], 0
    // Predicated region
    $region2: #{tpu_custom_call.1} parent=1 // pred_check
      _
    $region3: #{tpu_custom_call.1} parent=1 // pred_check_branch
      %11 = sbr.rel (0) target = $region5
    $region4: #{tpu_custom_call.1} parent=1 // pred_region
      %s13 = ssub.s32 1024, 1024
      %14 = vsyncadd [#allocation3], %s13
      %s15 = sshll.u32 [#allocation2], 4
      %s16 = int_to_ptr.vmem [resolvable:$true] %s15
      %21 = dma.hbm_to_vmem [thread:$0]  %s0, 1024, %s16, [#allocation3], 512, 512, 32
    $region5: #{tpu_custom_call.1} parent=1 // pred_fallthru
      _
    // Predicated region
    $region6: #{tpu_custom_call.1} parent=1 // pred_check
      _
    $region7: #{tpu_custom_call.1} parent=1 // pred_check_branch
      %23 = sbr.rel (0) target = $region9
    $region8: #{tpu_custom_call.1} parent=1 // pred_region
      %s25 = ssub.s32 64, 64
      %26 = vsyncadd [#allocation6], %s25
      %s28 = sshll.u32 [#allocation5], 4
      %s29 = int_to_ptr.vmem [resolvable:$true] %s28
      %31 = dma.hbm_to_vmem [thread:$0]  %s1, 64, %s29, [#allocation6]
    $region9: #{tpu_custom_call.1} parent=1 // pred_fallthru
      _
    // Predicated region
    $region10: #{tpu_custom_call.1} parent=1 // pred_check
      _
    $region11: #{tpu_custom_call.1} parent=1 // pred_check_branch
      %33 = sbr.rel (0) target = $region13
    $region12: #{tpu_custom_call.1} parent=1 // pred_region
      %34 = dma.done [#allocation3], 1024
    $region13: #{tpu_custom_call.1} parent=1 // pred_fallthru
      _
    // Predicated region
    $region14: #{tpu_custom_call.1} parent=1 // pred_check
      _
    $region15: #{tpu_custom_call.1} parent=1 // pred_check_branch
      %36 = sbr.rel (0) target = $region17
    $region16: #{tpu_custom_call.1} parent=1 // pred_region
      %37 = dma.done [#allocation6], 64
    $region17: #{tpu_custom_call.1} parent=1 // pred_fallthru
      _
    %v38 = vld [vmem:[#allocation2] sm:$0xff]
    %v39 = vld [vmem:[#allocation2 + $0x8] sm:$0xff]
    %v40 = vld [vmem:[#allocation2 + $0x10] sm:$0xff]
    %v41 = vld [vmem:[#allocation2 + $0x18] sm:$0xff]
    %v42 = vld [vmem:[#allocation2 + $0x20] sm:$0xff]
    %v43 = vld [vmem:[#allocation2 + $0x28] sm:$0xff]
    %v44 = vld [vmem:[#allocation2 + $0x30] sm:$0xff]
    %v45 = vld [vmem:[#allocation2 + $0x38] sm:$0xff]
    %v46 = vmul.f32 %v38, %v38
    %v47 = vmul.f32 %v39, %v39
    %v48 = vmul.f32 %v40, %v40
    %v49 = vmul.f32 %v41, %v41
    %v50 = vmul.f32 %v42, %v42
    %v51 = vmul.f32 %v43, %v43
    %v52 = vmul.f32 %v44, %v44
    %v53 = vmul.f32 %v45, %v45
    %v54 = vadd.f32 %v46, %v47
    %v55 = vadd.f32 %v54, %v48
    %v56 = vadd.f32 %v55, %v49
    %57 = vadd.xlane.f32.xlu0 %v56
    %v58 = vpop.xlane.xlu0 %57
    %v59 = vadd.f32 %v50, %v51
    %v60 = vadd.f32 %v59, %v52
    %v61 = vadd.f32 %v60, %v53
    %62 = vadd.xlane.f32.xlu0 %v61
    %v63 = vpop.xlane.xlu0 %62
    %v64 = vmul.f32 %v58, 0.001953125
    %v65 = vmul.f32 %v63, 0.001953125
    %v66 = vadd.f32 %v64, 1.1920929e-07
    %v67 = vadd.f32 %v65, 1.1920929e-07
    %v68 = vrsqrt.pop %v66
    %v69 = vrsqrt.pop %v67
    %v70 = vld [vmem:[#allocation5] sm:$0xf]
    %v71 = vmul.f32 %v38, %v68
    %v72 = vmul.f32 %v39, %v68
    %v73 = vmul.f32 %v40, %v68
    %v74 = vmul.f32 %v41, %v68
    %v75 = vmul.f32 %v42, %v69
    %v76 = vmul.f32 %v43, %v69
    %v77 = vmul.f32 %v44, %v69
    %v78 = vmul.f32 %v45, %v69
    %v80 = vlaneseq
    %v81 = vshrl.u32 %v80, 7
    %v82 = vsub.s32 0, %v81
    %v83 = vrot.slane %v70, %v82
    %v84 = vlaneseq
    %v85 = vshrl.u32 %v84, 7
    %v86 = vsub.s32 1, %v85
    %v87 = vrot.slane %v70, %v86
    %v88 = vlaneseq
    %v89 = vshrl.u32 %v88, 7
    %v90 = vsub.s32 2, %v89
    %v91 = vrot.slane %v70, %v90
    %v92 = vlaneseq
    %v93 = vshrl.u32 %v92, 7
    %v94 = vsub.s32 3, %v93
    %v95 = vrot.slane %v70, %v94
    %v100 = vmul.f32 %v71, %v83
    %v101 = vmul.f32 %v72, %v87
    %v102 = vmul.f32 %v73, %v91
    %v103 = vmul.f32 %v74, %v95
    %v104 = vmul.f32 %v75, %v83
    %v105 = vmul.f32 %v76, %v87
    %v106 = vmul.f32 %v77, %v91
    %v107 = vmul.f32 %v78, %v95
    %108 = vst [vmem:[#allocation7] sm:$0xff] %v100
    %109 = vst [vmem:[#allocation7 + $0x8] sm:$0xff] %v101
    %110 = vst [vmem:[#allocation7 + $0x10] sm:$0xff] %v102
    %111 = vst [vmem:[#allocation7 + $0x18] sm:$0xff] %v103
    %112 = vst [vmem:[#allocation7 + $0x20] sm:$0xff] %v104
    %113 = vst [vmem:[#allocation7 + $0x28] sm:$0xff] %v105
    %114 = vst [vmem:[#allocation7 + $0x30] sm:$0xff] %v106
    %115 = vst [vmem:[#allocation7 + $0x38] sm:$0xff] %v107
    // Predicated region
    $region18: #{tpu_custom_call.1} parent=1 // pred_check
      _
    $region19: #{tpu_custom_call.1} parent=1 // pred_check_branch
      %117 = sbr.rel (0) target = $region21
    $region20: #{tpu_custom_call.1} parent=1 // pred_region
      %s119 = ssub.s32 1024, 1024
      %120 = vsyncadd [#allocation4], %s119
      %s121 = sshll.u32 [#allocation7], 4
      %s122 = int_to_ptr.vmem [resolvable:$true] %s121
      %127 = dma.vmem_to_hbm [thread:$0]  %s122, 1024, %s2, [#allocation4], 512, 512, 32
    $region21: #{tpu_custom_call.1} parent=1 // pred_fallthru
      _
    // Predicated region
    $region22: #{tpu_custom_call.1} parent=1 // pred_check
      _
    $region23: #{tpu_custom_call.1} parent=1 // pred_check_branch
      %129 = sbr.rel (0) target = $region25
    $region24: #{tpu_custom_call.1} parent=1 // pred_region
      %130 = dma.done [#allocation4], 1024
    $region25: #{tpu_custom_call.1} parent=1 // pred_fallthru
      _
    %131 = vsyncpa [#allocation3], 1
    %132 = vsyncpa [#allocation6], 1
    %133 = vsyncpa [#allocation4], 1

</llo_original>
